<compile_context>
chip_gen: v5e
topology: v5e:2x2
jax: 0.10.0
libtpu: 0.0.40
codegen_flags: <defaults>
</compile_context>

<pallas_src>
import jax
import jax.numpy as jnp
from jax import lax
from jax.experimental import pallas as pl
from jax.experimental.pallas import tpu as pltpu


HIDDEN = 16  # embedding dim == LSTM hidden dim == linear in-features


def _lstm_linear_kernel(emb_ref, w_ih_ref, w_hh_ref, b_ref,
                        w_lin_ref, b_lin_ref, out_ref):
    """LSTM recurrence + fused Linear, all state register-resident.

    emb_ref   : (T*Bp, H)  f32  time-major, batch padded to Bp (mult. of 8)
    w_ih_ref  : (H, 4H)    f32  pre-transposed W_ih, gate order (i, f, o, g)
    w_hh_ref  : (H, 4H)    f32  pre-transposed W_hh, gate order (i, f, o, g)
    b_ref     : (1, 4H)    f32  b_ih + b_hh,        gate order (i, f, o, g)
    w_lin_ref : (1, H)     f32  Linear weight as a row (VMEM)
    b_lin_ref : (1,)       f32  Linear bias (SMEM scalar)
    out_ref   : (T, Bp)    f32  logits (wrapper turns into (B, T, 1))
    """
    H = w_ih_ref.shape[0]
    T, Bp = out_ref.shape

    # ---- Hoisted input projection: one matmul for ALL timesteps, bias folded
    #      in, result kept in vregs (T*Bp x 4H = 16 KB here -> a few vregs).
    gx = (jnp.dot(emb_ref[...], w_ih_ref[...],
                  preferred_element_type=jnp.float32)
          + b_ref[...])                                            # (T*Bp, 4H)

    w_hh = w_hh_ref[...]                                           # (H, 4H)
    w_row = w_lin_ref[...]                                         # (1, H)

    # ---- Serial recurrence, fully unrolled (T static, small).  Only one
    #      (Bp, H) x (H, 4H) matmul + ONE sigmoid + TWO tanh per step.
    #      Gate layout is (i | f | o | g) so a single sigmoid covers i,f,o.
    h = jnp.zeros((Bp, H), jnp.float32)
    c = jnp.zeros((Bp, H), jnp.float32)
    logits = []
    for t in range(T):  # static unroll -> static 8-row-aligned slices
        gates = gx[t * Bp:(t + 1) * Bp, :] + jnp.dot(
            h, w_hh, preferred_element_type=jnp.float32)           # (Bp, 4H)
        sig = jax.nn.sigmoid(gates[:, :3 * H])                     # i | f | o
        g_g = jnp.tanh(gates[:, 3 * H:])
        c = sig[:, H:2 * H] * c + sig[:, :H] * g_g
        h = sig[:, 2 * H:3 * H] * jnp.tanh(c)
        # Fused Linear(H -> 1): lane reduce on the XLU, hides under the
        # MXU/EUP recurrence of neighbouring (unrolled) steps.
        logits.append(jnp.sum(h * w_row, axis=-1)[None, :])        # (1, Bp)

    # ---- Single store of the whole logit slab; scalar bias from SMEM.
    out_ref[...] = jnp.concatenate(logits, axis=0) + b_lin_ref[0]  # (T, Bp)


def _reorder_gates_ifgo_to_ifog(w):
    """Permute the 4H gate axis from PyTorch (i,f,g,o) to kernel (i,f,o,g)."""
    H = w.shape[-1] // 4
    return jnp.concatenate(
        [w[..., :2 * H], w[..., 3 * H:4 * H], w[..., 2 * H:3 * H]], axis=-1)


def discriminator_forward(x_tokens, params):
    """x_tokens: (B, T) integer token ids. Returns (B, T, 1) float32."""
    B, T = x_tokens.shape
    H = HIDDEN
    Bp = ((B + 7) // 8) * 8  # pad batch to full sublanes

    # Gather directly in time-major order: transpose the tiny int token
    # matrix first (cheap) so no (B,T,H) -> (T,B,H) transpose of the
    # embedded activations is ever materialized.
    tok_tm = jnp.transpose(x_tokens.astype(jnp.int32))             # (T, B)
    emb_tm = jnp.take(params["emb"], tok_tm, axis=0)               # (T, B, H)
    emb_tm = jnp.pad(emb_tm.astype(jnp.float32),
                     ((0, 0), (0, Bp - B), (0, 0)))                # (T, Bp, H)
    emb_2d = emb_tm.reshape(T * Bp, H)                             # (T*Bp, H)

    # Host-side gate-column permutation (i,f,g,o) -> (i,f,o,g) so the kernel
    # can merge the three sigmoids into one EUP push per step.
    w_ih = _reorder_gates_ifgo_to_ifog(params["w_ih"])
    w_hh = _reorder_gates_ifgo_to_ifog(params["w_hh"])
    b = _reorder_gates_ifgo_to_ifog(params["b"])

    vmem = pl.BlockSpec(memory_space=pltpu.MemorySpace.VMEM)
    smem = pl.BlockSpec(memory_space=pltpu.MemorySpace.SMEM)
    out_tb = pl.pallas_call(
        _lstm_linear_kernel,
        out_shape=jax.ShapeDtypeStruct((T, Bp), jnp.float32),
        in_specs=[vmem, vmem, vmem, vmem, vmem, smem],
        out_specs=vmem,
    )(emb_2d, w_ih, w_hh, b,
      params["w_lin"].reshape(1, H), params["b_lin"].reshape(1))

    # (T, Bp) -> (B, T, 1), dropping the padded batch rows.
    return jnp.transpose(out_tb[:, :B])[..., None]


def discriminator_reference(x_tokens, params):
    """Pure-JAX reference (PyTorch gate order, lax.scan) for correctness."""
    emb = jnp.take(params["emb"], x_tokens.astype(jnp.int32), axis=0)  # (B,T,H)
    B, T, H = emb.shape
    w_ih, w_hh, b = params["w_ih"], params["w_hh"], params["b"]

    def step(carry, x_t):
        h, c = carry
        gates = x_t @ w_ih + h @ w_hh + b
        i_g = jax.nn.sigmoid(gates[:, 0 * H:1 * H])
        f_g = jax.nn.sigmoid(gates[:, 1 * H:2 * H])
        g_g = jnp.tanh(gates[:, 2 * H:3 * H])
        o_g = jax.nn.sigmoid(gates[:, 3 * H:4 * H])
        c_new = f_g * c + i_g * g_g
        h_new = o_g * jnp.tanh(c_new)
        return (h_new, c_new), h_new

    h0 = jnp.zeros((B, H), jnp.float32)
    c0 = jnp.zeros((B, H), jnp.float32)
    _, hs = lax.scan(step, (h0, c0), jnp.transpose(emb, (1, 0, 2)))  # (T,B,H)
    hs = jnp.transpose(hs, (1, 0, 2))                                # (B,T,H)
    return hs @ params["w_lin"] + params["b_lin"]                    # (B,T,1)


def make_params(n_tokens, key):
    """Deterministic synthetic parameters (PyTorch gate order i,f,g,o)."""
    H = HIDDEN
    k_emb, k_ih, k_hh, k_bi, k_bh, k_wl, k_bl = jax.random.split(key, 7)
    bound = 1.0 / jnp.sqrt(H)
    emb = jax.random.normal(k_emb, (n_tokens + 1, H), jnp.float32)
    w_ih = jax.random.uniform(k_ih, (H, 4 * H), jnp.float32, -bound, bound)
    w_hh = jax.random.uniform(k_hh, (H, 4 * H), jnp.float32, -bound, bound)
    b_ih = jax.random.uniform(k_bi, (4 * H,), jnp.float32, -bound, bound)
    b_hh = jax.random.uniform(k_bh, (4 * H,), jnp.float32, -bound, bound)
    w_lin = jax.random.uniform(k_wl, (H, 1), jnp.float32, -bound, bound)
    b_lin = jax.random.uniform(k_bl, (1, 1), jnp.float32, -bound, bound)
    return {
        "emb": emb,
        "w_ih": w_ih,
        "w_hh": w_hh,
        "b": (b_ih + b_hh).reshape(1, 4 * H),
        "w_lin": w_lin,
        "b_lin": b_lin,
    }


if __name__ == "__main__":
    n_tokens = 10
    batch, seq = 2, 8

    key = jax.random.PRNGKey(0)
    k_params, k_x = jax.random.split(key)
    params = make_params(n_tokens, k_params)
    # Token ids in [0, n_tokens] (embedding table has n_tokens + 1 rows).
    x = jax.random.randint(k_x, (batch, seq), 0, n_tokens + 1, dtype=jnp.int32)

    out = discriminator_forward(x, params)
    out = jax.block_until_ready(out)

    ref = discriminator_reference(x, params)
    assert out.shape == (batch, seq, 1)
    assert jnp.allclose(out, ref, atol=1e-5, rtol=1e-5), "mismatch vs reference"

    print("KERNEL_OK")
</pallas_src>

<mosaic_0001>
module attributes {stable_mosaic.version = 11 : i64} {
  func.func @_lstm_linear_kernel(%arg0: memref<64x16xf32, #tpu.memory_space<vmem>>, %arg1: memref<16x64xf32, #tpu.memory_space<vmem>>, %arg2: memref<16x64xf32, #tpu.memory_space<vmem>>, %arg3: memref<1x64xf32, #tpu.memory_space<vmem>>, %arg4: memref<1x16xf32, #tpu.memory_space<vmem>>, %arg5: memref<1xf32, #tpu.memory_space<smem>>, %arg6: memref<8x8xf32, #tpu.memory_space<vmem>>) attributes {dimension_semantics = [], scalar_prefetch = 0 : i64, scratch_operands = 0 : i64, tpu.core_type = #tpu.core_type<tc>} {
    %c0 = arith.constant 0 : index
    %c0_0 = arith.constant 0 : index
    %0 = vector.load %arg0[%c0, %c0_0] : memref<64x16xf32, #tpu.memory_space<vmem>>, vector<64x16xf32>
    %c0_1 = arith.constant 0 : index
    %c0_2 = arith.constant 0 : index
    %1 = vector.load %arg1[%c0_1, %c0_2] : memref<16x64xf32, #tpu.memory_space<vmem>>, vector<16x64xf32>
    %cst = arith.constant dense<0.000000e+00> : vector<64x64xf32>
    %2 = tpu.matmul %0, %1, %cst {dimension_numbers = #tpu.dot_dimension_numbers<[1], [0], [0], [1], [0, 0, 1, 1], [], []>} : vector<64x16xf32>, vector<16x64xf32>, vector<64x64xf32> -> vector<64x64xf32>
    %c0_3 = arith.constant 0 : index
    %c0_4 = arith.constant 0 : index
    %3 = vector.load %arg3[%c0_3, %c0_4] : memref<1x64xf32, #tpu.memory_space<vmem>>, vector<1x64xf32>
    %4 = vector.broadcast %3 : vector<1x64xf32> to vector<64x64xf32>
    %5 = arith.addf %2, %4 : vector<64x64xf32>
    %c0_5 = arith.constant 0 : index
    %c0_6 = arith.constant 0 : index
    %6 = vector.load %arg2[%c0_5, %c0_6] : memref<16x64xf32, #tpu.memory_space<vmem>>, vector<16x64xf32>
    %c0_7 = arith.constant 0 : index
    %c0_8 = arith.constant 0 : index
    %7 = vector.load %arg4[%c0_7, %c0_8] : memref<1x16xf32, #tpu.memory_space<vmem>>, vector<1x16xf32>
    %cst_9 = arith.constant 0.000000e+00 : f32
    %8 = vector.broadcast %cst_9 : f32 to vector<8x16xf32>
    %cst_10 = arith.constant 0.000000e+00 : f32
    %9 = vector.broadcast %cst_10 : f32 to vector<8x16xf32>
    %10 = vector.extract_strided_slice %5 {offsets = [0, 0], sizes = [8, 64], strides = [1, 1]} : vector<64x64xf32> to vector<8x64xf32>
    %cst_11 = arith.constant dense<0.000000e+00> : vector<8x64xf32>
    %11 = tpu.matmul %8, %6, %cst_11 {dimension_numbers = #tpu.dot_dimension_numbers<[1], [0], [0], [1], [0, 0, 1, 1], [], []>} : vector<8x16xf32>, vector<16x64xf32>, vector<8x64xf32> -> vector<8x64xf32>
    %12 = arith.addf %10, %11 : vector<8x64xf32>
    %13 = vector.extract_strided_slice %12 {offsets = [0, 0], sizes = [8, 48], strides = [1, 1]} : vector<8x64xf32> to vector<8x48xf32>
    %14 = arith.negf %13 : vector<8x48xf32>
    %15 = math.exp %14 : vector<8x48xf32>
    %cst_12 = arith.constant 1.000000e+00 : f32
    %16 = vector.broadcast %cst_12 : f32 to vector<8x48xf32>
    %17 = arith.addf %16, %15 : vector<8x48xf32>
    %18 = arith.divf %16, %17 : vector<8x48xf32>
    %19 = vector.extract_strided_slice %12 {offsets = [0, 48], sizes = [8, 16], strides = [1, 1]} : vector<8x64xf32> to vector<8x16xf32>
    %20 = math.tanh %19 : vector<8x16xf32>
    %21 = vector.extract_strided_slice %18 {offsets = [0, 16], sizes = [8, 16], strides = [1, 1]} : vector<8x48xf32> to vector<8x16xf32>
    %22 = arith.mulf %21, %9 : vector<8x16xf32>
    %23 = vector.extract_strided_slice %18 {offsets = [0, 0], sizes = [8, 16], strides = [1, 1]} : vector<8x48xf32> to vector<8x16xf32>
    %24 = arith.mulf %23, %20 : vector<8x16xf32>
    %25 = arith.addf %22, %24 : vector<8x16xf32>
    %26 = vector.extract_strided_slice %18 {offsets = [0, 32], sizes = [8, 16], strides = [1, 1]} : vector<8x48xf32> to vector<8x16xf32>
    %27 = math.tanh %25 : vector<8x16xf32>
    %28 = arith.mulf %26, %27 : vector<8x16xf32>
    %29 = vector.broadcast %7 : vector<1x16xf32> to vector<8x16xf32>
    %30 = arith.mulf %28, %29 : vector<8x16xf32>
    %cst_13 = arith.constant dense<0.000000e+00> : vector<8xf32>
    %31 = vector.multi_reduction <add>, %30, %cst_13 [1] : vector<8x16xf32> to vector<8xf32>
    %32 = vector.shape_cast %31 : vector<8xf32> to vector<1x8xf32>
    %33 = vector.extract_strided_slice %5 {offsets = [8, 0], sizes = [8, 64], strides = [1, 1]} : vector<64x64xf32> to vector<8x64xf32>
    %cst_14 = arith.constant dense<0.000000e+00> : vector<8x64xf32>
    %34 = tpu.matmul %28, %6, %cst_14 {dimension_numbers = #tpu.dot_dimension_numbers<[1], [0], [0], [1], [0, 0, 1, 1], [], []>} : vector<8x16xf32>, vector<16x64xf32>, vector<8x64xf32> -> vector<8x64xf32>
    %35 = arith.addf %33, %34 : vector<8x64xf32>
    %36 = vector.extract_strided_slice %35 {offsets = [0, 0], sizes = [8, 48], strides = [1, 1]} : vector<8x64xf32> to vector<8x48xf32>
    %37 = arith.negf %36 : vector<8x48xf32>
    %38 = math.exp %37 : vector<8x48xf32>
    %cst_15 = arith.constant 1.000000e+00 : f32
    %39 = vector.broadcast %cst_15 : f32 to vector<8x48xf32>
    %40 = arith.addf %39, %38 : vector<8x48xf32>
    %41 = arith.divf %39, %40 : vector<8x48xf32>
    %42 = vector.extract_strided_slice %35 {offsets = [0, 48], sizes = [8, 16], strides = [1, 1]} : vector<8x64xf32> to vector<8x16xf32>
    %43 = math.tanh %42 : vector<8x16xf32>
    %44 = vector.extract_strided_slice %41 {offsets = [0, 16], sizes = [8, 16], strides = [1, 1]} : vector<8x48xf32> to vector<8x16xf32>
    %45 = arith.mulf %44, %25 : vector<8x16xf32>
    %46 = vector.extract_strided_slice %41 {offsets = [0, 0], sizes = [8, 16], strides = [1, 1]} : vector<8x48xf32> to vector<8x16xf32>
    %47 = arith.mulf %46, %43 : vector<8x16xf32>
    %48 = arith.addf %45, %47 : vector<8x16xf32>
    %49 = vector.extract_strided_slice %41 {offsets = [0, 32], sizes = [8, 16], strides = [1, 1]} : vector<8x48xf32> to vector<8x16xf32>
    %50 = math.tanh %48 : vector<8x16xf32>
    %51 = arith.mulf %49, %50 : vector<8x16xf32>
    %52 = vector.broadcast %7 : vector<1x16xf32> to vector<8x16xf32>
    %53 = arith.mulf %51, %52 : vector<8x16xf32>
    %cst_16 = arith.constant dense<0.000000e+00> : vector<8xf32>
    %54 = vector.multi_reduction <add>, %53, %cst_16 [1] : vector<8x16xf32> to vector<8xf32>
    %55 = vector.shape_cast %54 : vector<8xf32> to vector<1x8xf32>
    %56 = vector.extract_strided_slice %5 {offsets = [16, 0], sizes = [8, 64], strides = [1, 1]} : vector<64x64xf32> to vector<8x64xf32>
    %cst_17 = arith.constant dense<0.000000e+00> : vector<8x64xf32>
    %57 = tpu.matmul %51, %6, %cst_17 {dimension_numbers = #tpu.dot_dimension_numbers<[1], [0], [0], [1], [0, 0, 1, 1], [], []>} : vector<8x16xf32>, vector<16x64xf32>, vector<8x64xf32> -> vector<8x64xf32>
    %58 = arith.addf %56, %57 : vector<8x64xf32>
    %59 = vector.extract_strided_slice %58 {offsets = [0, 0], sizes = [8, 48], strides = [1, 1]} : vector<8x64xf32> to vector<8x48xf32>
    %60 = arith.negf %59 : vector<8x48xf32>
    %61 = math.exp %60 : vector<8x48xf32>
    %cst_18 = arith.constant 1.000000e+00 : f32
    %62 = vector.broadcast %cst_18 : f32 to vector<8x48xf32>
    %63 = arith.addf %62, %61 : vector<8x48xf32>
    %64 = arith.divf %62, %63 : vector<8x48xf32>
    %65 = vector.extract_strided_slice %58 {offsets = [0, 48], sizes = [8, 16], strides = [1, 1]} : vector<8x64xf32> to vector<8x16xf32>
    %66 = math.tanh %65 : vector<8x16xf32>
    %67 = vector.extract_strided_slice %64 {offsets = [0, 16], sizes = [8, 16], strides = [1, 1]} : vector<8x48xf32> to vector<8x16xf32>
    %68 = arith.mulf %67, %48 : vector<8x16xf32>
    %69 = vector.extract_strided_slice %64 {offsets = [0, 0], sizes = [8, 16], strides = [1, 1]} : vector<8x48xf32> to vector<8x16xf32>
    %70 = arith.mulf %69, %66 : vector<8x16xf32>
    %71 = arith.addf %68, %70 : vector<8x16xf32>
    %72 = vector.extract_strided_slice %64 {offsets = [0, 32], sizes = [8, 16], strides = [1, 1]} : vector<8x48xf32> to vector<8x16xf32>
    %73 = math.tanh %71 : vector<8x16xf32>
    %74 = arith.mulf %72, %73 : vector<8x16xf32>
    %75 = vector.broadcast %7 : vector<1x16xf32> to vector<8x16xf32>
    %76 = arith.mulf %74, %75 : vector<8x16xf32>
    %cst_19 = arith.constant dense<0.000000e+00> : vector<8xf32>
    %77 = vector.multi_reduction <add>, %76, %cst_19 [1] : vector<8x16xf32> to vector<8xf32>
    %78 = vector.shape_cast %77 : vector<8xf32> to vector<1x8xf32>
    %79 = vector.extract_strided_slice %5 {offsets = [24, 0], sizes = [8, 64], strides = [1, 1]} : vector<64x64xf32> to vector<8x64xf32>
    %cst_20 = arith.constant dense<0.000000e+00> : vector<8x64xf32>
    %80 = tpu.matmul %74, %6, %cst_20 {dimension_numbers = #tpu.dot_dimension_numbers<[1], [0], [0], [1], [0, 0, 1, 1], [], []>} : vector<8x16xf32>, vector<16x64xf32>, vector<8x64xf32> -> vector<8x64xf32>
    %81 = arith.addf %79, %80 : vector<8x64xf32>
    %82 = vector.extract_strided_slice %81 {offsets = [0, 0], sizes = [8, 48], strides = [1, 1]} : vector<8x64xf32> to vector<8x48xf32>
    %83 = arith.negf %82 : vector<8x48xf32>
    %84 = math.exp %83 : vector<8x48xf32>
    %cst_21 = arith.constant 1.000000e+00 : f32
    %85 = vector.broadcast %cst_21 : f32 to vector<8x48xf32>
    %86 = arith.addf %85, %84 : vector<8x48xf32>
    %87 = arith.divf %85, %86 : vector<8x48xf32>
    %88 = vector.extract_strided_slice %81 {offsets = [0, 48], sizes = [8, 16], strides = [1, 1]} : vector<8x64xf32> to vector<8x16xf32>
    %89 = math.tanh %88 : vector<8x16xf32>
    %90 = vector.extract_strided_slice %87 {offsets = [0, 16], sizes = [8, 16], strides = [1, 1]} : vector<8x48xf32> to vector<8x16xf32>
    %91 = arith.mulf %90, %71 : vector<8x16xf32>
    %92 = vector.extract_strided_slice %87 {offsets = [0, 0], sizes = [8, 16], strides = [1, 1]} : vector<8x48xf32> to vector<8x16xf32>
    %93 = arith.mulf %92, %89 : vector<8x16xf32>
    %94 = arith.addf %91, %93 : vector<8x16xf32>
    %95 = vector.extract_strided_slice %87 {offsets = [0, 32], sizes = [8, 16], strides = [1, 1]} : vector<8x48xf32> to vector<8x16xf32>
    %96 = math.tanh %94 : vector<8x16xf32>
    %97 = arith.mulf %95, %96 : vector<8x16xf32>
    %98 = vector.broadcast %7 : vector<1x16xf32> to vector<8x16xf32>
    %99 = arith.mulf %97, %98 : vector<8x16xf32>
    %cst_22 = arith.constant dense<0.000000e+00> : vector<8xf32>
    %100 = vector.multi_reduction <add>, %99, %cst_22 [1] : vector<8x16xf32> to vector<8xf32>
    %101 = vector.shape_cast %100 : vector<8xf32> to vector<1x8xf32>
    %102 = vector.extract_strided_slice %5 {offsets = [32, 0], sizes = [8, 64], strides = [1, 1]} : vector<64x64xf32> to vector<8x64xf32>
    %cst_23 = arith.constant dense<0.000000e+00> : vector<8x64xf32>
    %103 = tpu.matmul %97, %6, %cst_23 {dimension_numbers = #tpu.dot_dimension_numbers<[1], [0], [0], [1], [0, 0, 1, 1], [], []>} : vector<8x16xf32>, vector<16x64xf32>, vector<8x64xf32> -> vector<8x64xf32>
    %104 = arith.addf %102, %103 : vector<8x64xf32>
    %105 = vector.extract_strided_slice %104 {offsets = [0, 0], sizes = [8, 48], strides = [1, 1]} : vector<8x64xf32> to vector<8x48xf32>
    %106 = arith.negf %105 : vector<8x48xf32>
    %107 = math.exp %106 : vector<8x48xf32>
    %cst_24 = arith.constant 1.000000e+00 : f32
    %108 = vector.broadcast %cst_24 : f32 to vector<8x48xf32>
    %109 = arith.addf %108, %107 : vector<8x48xf32>
    %110 = arith.divf %108, %109 : vector<8x48xf32>
    %111 = vector.extract_strided_slice %104 {offsets = [0, 48], sizes = [8, 16], strides = [1, 1]} : vector<8x64xf32> to vector<8x16xf32>
    %112 = math.tanh %111 : vector<8x16xf32>
    %113 = vector.extract_strided_slice %110 {offsets = [0, 16], sizes = [8, 16], strides = [1, 1]} : vector<8x48xf32> to vector<8x16xf32>
    %114 = arith.mulf %113, %94 : vector<8x16xf32>
    %115 = vector.extract_strided_slice %110 {offsets = [0, 0], sizes = [8, 16], strides = [1, 1]} : vector<8x48xf32> to vector<8x16xf32>
    %116 = arith.mulf %115, %112 : vector<8x16xf32>
    %117 = arith.addf %114, %116 : vector<8x16xf32>
    %118 = vector.extract_strided_slice %110 {offsets = [0, 32], sizes = [8, 16], strides = [1, 1]} : vector<8x48xf32> to vector<8x16xf32>
    %119 = math.tanh %117 : vector<8x16xf32>
    %120 = arith.mulf %118, %119 : vector<8x16xf32>
    %121 = vector.broadcast %7 : vector<1x16xf32> to vector<8x16xf32>
    %122 = arith.mulf %120, %121 : vector<8x16xf32>
    %cst_25 = arith.constant dense<0.000000e+00> : vector<8xf32>
    %123 = vector.multi_reduction <add>, %122, %cst_25 [1] : vector<8x16xf32> to vector<8xf32>
    %124 = vector.shape_cast %123 : vector<8xf32> to vector<1x8xf32>
    %125 = vector.extract_strided_slice %5 {offsets = [40, 0], sizes = [8, 64], strides = [1, 1]} : vector<64x64xf32> to vector<8x64xf32>
    %cst_26 = arith.constant dense<0.000000e+00> : vector<8x64xf32>
    %126 = tpu.matmul %120, %6, %cst_26 {dimension_numbers = #tpu.dot_dimension_numbers<[1], [0], [0], [1], [0, 0, 1, 1], [], []>} : vector<8x16xf32>, vector<16x64xf32>, vector<8x64xf32> -> vector<8x64xf32>
    %127 = arith.addf %125, %126 : vector<8x64xf32>
    %128 = vector.extract_strided_slice %127 {offsets = [0, 0], sizes = [8, 48], strides = [1, 1]} : vector<8x64xf32> to vector<8x48xf32>
    %129 = arith.negf %128 : vector<8x48xf32>
    %130 = math.exp %129 : vector<8x48xf32>
    %cst_27 = arith.constant 1.000000e+00 : f32
    %131 = vector.broadcast %cst_27 : f32 to vector<8x48xf32>
    %132 = arith.addf %131, %130 : vector<8x48xf32>
    %133 = arith.divf %131, %132 : vector<8x48xf32>
    %134 = vector.extract_strided_slice %127 {offsets = [0, 48], sizes = [8, 16], strides = [1, 1]} : vector<8x64xf32> to vector<8x16xf32>
    %135 = math.tanh %134 : vector<8x16xf32>
    %136 = vector.extract_strided_slice %133 {offsets = [0, 16], sizes = [8, 16], strides = [1, 1]} : vector<8x48xf32> to vector<8x16xf32>
    %137 = arith.mulf %136, %117 : vector<8x16xf32>
    %138 = vector.extract_strided_slice %133 {offsets = [0, 0], sizes = [8, 16], strides = [1, 1]} : vector<8x48xf32> to vector<8x16xf32>
    %139 = arith.mulf %138, %135 : vector<8x16xf32>
    %140 = arith.addf %137, %139 : vector<8x16xf32>
    %141 = vector.extract_strided_slice %133 {offsets = [0, 32], sizes = [8, 16], strides = [1, 1]} : vector<8x48xf32> to vector<8x16xf32>
    %142 = math.tanh %140 : vector<8x16xf32>
    %143 = arith.mulf %141, %142 : vector<8x16xf32>
    %144 = vector.broadcast %7 : vector<1x16xf32> to vector<8x16xf32>
    %145 = arith.mulf %143, %144 : vector<8x16xf32>
    %cst_28 = arith.constant dense<0.000000e+00> : vector<8xf32>
    %146 = vector.multi_reduction <add>, %145, %cst_28 [1] : vector<8x16xf32> to vector<8xf32>
    %147 = vector.shape_cast %146 : vector<8xf32> to vector<1x8xf32>
    %148 = vector.extract_strided_slice %5 {offsets = [48, 0], sizes = [8, 64], strides = [1, 1]} : vector<64x64xf32> to vector<8x64xf32>
    %cst_29 = arith.constant dense<0.000000e+00> : vector<8x64xf32>
    %149 = tpu.matmul %143, %6, %cst_29 {dimension_numbers = #tpu.dot_dimension_numbers<[1], [0], [0], [1], [0, 0, 1, 1], [], []>} : vector<8x16xf32>, vector<16x64xf32>, vector<8x64xf32> -> vector<8x64xf32>
    %150 = arith.addf %148, %149 : vector<8x64xf32>
    %151 = vector.extract_strided_slice %150 {offsets = [0, 0], sizes = [8, 48], strides = [1, 1]} : vector<8x64xf32> to vector<8x48xf32>
    %152 = arith.negf %151 : vector<8x48xf32>
    %153 = math.exp %152 : vector<8x48xf32>
    %cst_30 = arith.constant 1.000000e+00 : f32
    %154 = vector.broadcast %cst_30 : f32 to vector<8x48xf32>
    %155 = arith.addf %154, %153 : vector<8x48xf32>
    %156 = arith.divf %154, %155 : vector<8x48xf32>
    %157 = vector.extract_strided_slice %150 {offsets = [0, 48], sizes = [8, 16], strides = [1, 1]} : vector<8x64xf32> to vector<8x16xf32>
    %158 = math.tanh %157 : vector<8x16xf32>
    %159 = vector.extract_strided_slice %156 {offsets = [0, 16], sizes = [8, 16], strides = [1, 1]} : vector<8x48xf32> to vector<8x16xf32>
    %160 = arith.mulf %159, %140 : vector<8x16xf32>
    %161 = vector.extract_strided_slice %156 {offsets = [0, 0], sizes = [8, 16], strides = [1, 1]} : vector<8x48xf32> to vector<8x16xf32>
    %162 = arith.mulf %161, %158 : vector<8x16xf32>
    %163 = arith.addf %160, %162 : vector<8x16xf32>
    %164 = vector.extract_strided_slice %156 {offsets = [0, 32], sizes = [8, 16], strides = [1, 1]} : vector<8x48xf32> to vector<8x16xf32>
    %165 = math.tanh %163 : vector<8x16xf32>
    %166 = arith.mulf %164, %165 : vector<8x16xf32>
    %167 = vector.broadcast %7 : vector<1x16xf32> to vector<8x16xf32>
    %168 = arith.mulf %166, %167 : vector<8x16xf32>
    %cst_31 = arith.constant dense<0.000000e+00> : vector<8xf32>
    %169 = vector.multi_reduction <add>, %168, %cst_31 [1] : vector<8x16xf32> to vector<8xf32>
    %170 = vector.shape_cast %169 : vector<8xf32> to vector<1x8xf32>
    %171 = vector.extract_strided_slice %5 {offsets = [56, 0], sizes = [8, 64], strides = [1, 1]} : vector<64x64xf32> to vector<8x64xf32>
    %cst_32 = arith.constant dense<0.000000e+00> : vector<8x64xf32>
    %172 = tpu.matmul %166, %6, %cst_32 {dimension_numbers = #tpu.dot_dimension_numbers<[1], [0], [0], [1], [0, 0, 1, 1], [], []>} : vector<8x16xf32>, vector<16x64xf32>, vector<8x64xf32> -> vector<8x64xf32>
    %173 = arith.addf %171, %172 : vector<8x64xf32>
    %174 = vector.extract_strided_slice %173 {offsets = [0, 0], sizes = [8, 48], strides = [1, 1]} : vector<8x64xf32> to vector<8x48xf32>
    %175 = arith.negf %174 : vector<8x48xf32>
    %176 = math.exp %175 : vector<8x48xf32>
    %cst_33 = arith.constant 1.000000e+00 : f32
    %177 = vector.broadcast %cst_33 : f32 to vector<8x48xf32>
    %178 = arith.addf %177, %176 : vector<8x48xf32>
    %179 = arith.divf %177, %178 : vector<8x48xf32>
    %180 = vector.extract_strided_slice %173 {offsets = [0, 48], sizes = [8, 16], strides = [1, 1]} : vector<8x64xf32> to vector<8x16xf32>
    %181 = math.tanh %180 : vector<8x16xf32>
    %182 = vector.extract_strided_slice %179 {offsets = [0, 16], sizes = [8, 16], strides = [1, 1]} : vector<8x48xf32> to vector<8x16xf32>
    %183 = arith.mulf %182, %163 : vector<8x16xf32>
    %184 = vector.extract_strided_slice %179 {offsets = [0, 0], sizes = [8, 16], strides = [1, 1]} : vector<8x48xf32> to vector<8x16xf32>
    %185 = arith.mulf %184, %181 : vector<8x16xf32>
    %186 = arith.addf %183, %185 : vector<8x16xf32>
    %187 = vector.extract_strided_slice %179 {offsets = [0, 32], sizes = [8, 16], strides = [1, 1]} : vector<8x48xf32> to vector<8x16xf32>
    %188 = math.tanh %186 : vector<8x16xf32>
    %189 = arith.mulf %187, %188 : vector<8x16xf32>
    %190 = vector.broadcast %7 : vector<1x16xf32> to vector<8x16xf32>
    %191 = arith.mulf %189, %190 : vector<8x16xf32>
    %cst_34 = arith.constant dense<0.000000e+00> : vector<8xf32>
    %192 = vector.multi_reduction <add>, %191, %cst_34 [1] : vector<8x16xf32> to vector<8xf32>
    %193 = vector.shape_cast %192 : vector<8xf32> to vector<1x8xf32>
    %194 = tpu.concatenate %32, %55, %78, %101, %124, %147, %170, %193 in 0 : vector<1x8xf32>, vector<1x8xf32>, vector<1x8xf32>, vector<1x8xf32>, vector<1x8xf32>, vector<1x8xf32>, vector<1x8xf32>, vector<1x8xf32> -> vector<8x8xf32>
    %c0_35 = arith.constant 0 : index
    %195 = memref.load %arg5[%c0_35] : memref<1xf32, #tpu.memory_space<smem>>
    %196 = vector.broadcast %195 : f32 to vector<8x8xf32>
    %197 = arith.addf %194, %196 : vector<8x8xf32>
    %c0_36 = arith.constant 0 : index
    %c0_37 = arith.constant 0 : index
    %198 = vector.load %arg6[%c0_36, %c0_37] : memref<8x8xf32, #tpu.memory_space<vmem>>, vector<8x8xf32>
    tpu.vector_store %arg6[%c0_36, %c0_37], %197 {strides = array<i32>} : memref<8x8xf32, #tpu.memory_space<vmem>>, vector<8x8xf32>,
    return
  }
}

</mosaic_0001>

<llo_original>
// kernel: tpu_custom_call.1
$region0: #{tpu_custom_call.1}
  #allocation0 [shape = 'u32[]', space=smem, size = 0x4, offset = 0x4, fixed_abs, tag = 'smem constant byte address 0x4 - core index']
  #allocation1 [shape = 'u32[72,128]{1,0:T(1,128)}', space=vmem, size = 0x9000, scoped, tag = 'internal scratch']
  #allocation2 [shape = 'f32[1]{0:T(128)S(6)}', space=smem, size = 0x200, scoped, tag = 'scoped memory for tpu_custom_call.1']
  %s0 = inlined_call_operand.vmem [shape: f32[64,16], index: 0, kind: input, shape index: {}]
  %s1 = inlined_call_operand.vmem [shape: f32[16,64], index: 1, kind: input, shape index: {}]
  %s2 = inlined_call_operand.vmem [shape: f32[16,64], index: 2, kind: input, shape index: {}]
  %s3 = inlined_call_operand.vmem [shape: f32[1,64], index: 3, kind: input, shape index: {}]
  %s4 = inlined_call_operand.vmem [shape: f32[1,16], index: 4, kind: input, shape index: {}]
  %s5 = inlined_call_operand.<no memory space> [shape: f32[1], index: 5, kind: input, shape index: {}]
  %s6 = inlined_call_operand.hbm [shape: f32[8,8], index: 6, kind: output, shape index: {}]
  %s7 = sld [smem:[#allocation0]]
  $region34: #{tpu_custom_call.1} parent=0
    _
  %s9 = ssub.s32 1, %s7
  %s10 = scalar_select 0, %s9, %s7
  %11 = sst [smem:[#allocation2]] %s5
  $region1: #{tpu_custom_call.1} parent=0
    #allocation3 [shape = 'u8[4096]{0}', space=vmem, size = 0x1000, scoped, tag = 'output window, operand 0, single buffered']
    #allocation4 [shape = 's32[1]{0}', space=sflag, size = 0x4, scoped, tag = 'scoped memory for tpu_custom_call.1']
    %12 = vsyncpa [#allocation4], 0
    // Predicated region
    $region2: #{tpu_custom_call.1} parent=1 // pred_check
      _
    $region3: #{tpu_custom_call.1} parent=1 // pred_check_branch
      %14 = sbr.rel (0) target = $region5
    $region4: #{tpu_custom_call.1} parent=1 // pred_region
      _
    $region5: #{tpu_custom_call.1} parent=1 // pred_fallthru
      _
    // Predicated region
    $region6: #{tpu_custom_call.1} parent=1 // pred_check
      _
    $region7: #{tpu_custom_call.1} parent=1 // pred_check_branch
      %16 = sbr.rel (0) target = $region9
    $region8: #{tpu_custom_call.1} parent=1 // pred_region
      _
    $region9: #{tpu_custom_call.1} parent=1 // pred_fallthru
      _
    // Predicated region
    $region10: #{tpu_custom_call.1} parent=1 // pred_check
      _
    $region11: #{tpu_custom_call.1} parent=1 // pred_check_branch
      %18 = sbr.rel (0) target = $region13
    $region12: #{tpu_custom_call.1} parent=1 // pred_region
      _
    $region13: #{tpu_custom_call.1} parent=1 // pred_fallthru
      _
    // Predicated region
    $region14: #{tpu_custom_call.1} parent=1 // pred_check
      _
    $region15: #{tpu_custom_call.1} parent=1 // pred_check_branch
      %20 = sbr.rel (0) target = $region17
    $region16: #{tpu_custom_call.1} parent=1 // pred_region
      _
    $region17: #{tpu_custom_call.1} parent=1 // pred_fallthru
      _
    // Predicated region
    $region18: #{tpu_custom_call.1} parent=1 // pred_check
      _
    $region19: #{tpu_custom_call.1} parent=1 // pred_check_branch
      %22 = sbr.rel (0) target = $region21
    $region20: #{tpu_custom_call.1} parent=1 // pred_region
      _
    $region21: #{tpu_custom_call.1} parent=1 // pred_fallthru
      _
    // Predicated region
    $region22: #{tpu_custom_call.1} parent=1 // pred_check
      _
    $region23: #{tpu_custom_call.1} parent=1 // pred_check_branch
      %24 = sbr.rel (0) target = $region25
    $region24: #{tpu_custom_call.1} parent=1 // pred_region
      _
    $region25: #{tpu_custom_call.1} parent=1 // pred_fallthru
      _
    %v25 = vld [vmem:[%s0] sm:$0xff]
    %v26 = vld [vmem:[%s0 + $0x8] sm:$0xff]
    %v27 = vld [vmem:[%s0 + $0x10] sm:$0xff]
    %v28 = vld [vmem:[%s0 + $0x18] sm:$0xff]
    %v29 = vld [vmem:[%s0 + $0x20] sm:$0xff]
    %v30 = vld [vmem:[%s0 + $0x28] sm:$0xff]
    %v31 = vld [vmem:[%s0 + $0x30] sm:$0xff]
    %v32 = vld [vmem:[%s0 + $0x38] sm:$0xff]
    %v33 = vld [vmem:[%s1] sm:$0xff]
    %v34 = vld [vmem:[%s1 + $0x8] sm:$0xff]
    %v35 = vld [vmem:[%s3] sm:$0x1]
    %v37 = vperm.slane %v35, 0
    %vm39 = vcmask 130048
    %v41 = vsel %vm39, %v25, 0
    %v44 = vsel %vm39, %v26, 0
    %v47 = vsel %vm39, %v27, 0
    %v50 = vsel %vm39, %v28, 0
    %v53 = vsel %vm39, %v29, 0
    %v56 = vsel %vm39, %v30, 0
    %v59 = vsel %vm39, %v31, 0
    %v62 = vsel %vm39, %v32, 0
    %64 = vmatpush.msra.mxu0 0.0
    %65 = vmatpush.msra.mxu0 0.0
    %66 = vmatpush.msra.mxu0 0.0
    %67 = vmatpush.msra.mxu0 0.0
    %68 = vmatpush.msra.mxu0 0.0
    %69 = vmatpush.msra.mxu0 0.0
    %70 = vmatpush.msra.mxu0 0.0
    %71 = vmatpush.msra.mxu0 0.0
    %72 = vmatpush.msra.mxu0 0.0
    %73 = vmatpush.msra.mxu0 0.0
    %74 = vmatpush.msra.mxu0 0.0
    %75 = vmatpush.msra.mxu0 0.0
    %76 = vmatpush.msra.mxu0 0.0
    %77 = vmatpush.msra.mxu0 0.0
    %78 = vmatpush.msra.mxu0 %v34
    %79 = vmatpush.msra.mxu0 %v33
    %80 = vmatmul.f32.gmra.mxu0 %v41
    %v81 = vpop.f32.mrf.mxu0
    %v82 = vadd.f32 %v37, %v81
    %83 = vmatmul.f32.gmra.mxu0 %v44
    %v84 = vpop.f32.mrf.mxu0
    %v85 = vadd.f32 %v37, %v84
    %86 = vmatmul.f32.gmra.mxu0 %v47
    %v87 = vpop.f32.mrf.mxu0
    %v88 = vadd.f32 %v37, %v87
    %89 = vmatmul.f32.gmra.mxu0 %v50
    %v90 = vpop.f32.mrf.mxu0
    %v91 = vadd.f32 %v37, %v90
    %92 = vmatmul.f32.gmra.mxu0 %v53
    %v93 = vpop.f32.mrf.mxu0
    %v94 = vadd.f32 %v37, %v93
    %95 = vmatmul.f32.gmra.mxu0 %v56
    %v96 = vpop.f32.mrf.mxu0
    %v97 = vadd.f32 %v37, %v96
    %98 = vmatmul.f32.gmra.mxu0 %v59
    %v99 = vpop.f32.mrf.mxu0
    %v100 = vadd.f32 %v37, %v99
    %101 = vmatmul.f32.gmra.mxu0 %v62
    %v102 = vpop.f32.mrf.mxu0
    %v103 = vadd.f32 %v37, %v102
    %104 = vdwg.mxu0
    %v105 = vld [vmem:[%s2] sm:$0xff]
    %v106 = vld [vmem:[%s2 + $0x8] sm:$0xff]
    %v107 = vld [vmem:[%s4] sm:$0x1]
    %v109 = vsel %vm39, 0.0, 0
    %111 = vmatpush.msra.mxu0 0.0
    %112 = vmatpush.msra.mxu0 0.0
    %113 = vmatpush.msra.mxu0 0.0
    %114 = vmatpush.msra.mxu0 0.0
    %115 = vmatpush.msra.mxu0 0.0
    %116 = vmatpush.msra.mxu0 0.0
    %117 = vmatpush.msra.mxu0 0.0
    %118 = vmatpush.msra.mxu0 0.0
    %119 = vmatpush.msra.mxu0 0.0
    %120 = vmatpush.msra.mxu0 0.0
    %121 = vmatpush.msra.mxu0 0.0
    %122 = vmatpush.msra.mxu0 0.0
    %123 = vmatpush.msra.mxu0 0.0
    %124 = vmatpush.msra.mxu0 0.0
    %125 = vmatpush.msra.mxu0 %v106
    %126 = vmatpush.msra.mxu0 %v105
    %127 = vmatmul.f32.gmra.mxu0 %v109
    %v128 = vpop.f32.mrf.mxu0
    %v129 = vadd.f32 0.0, %v128
    %130 = vdwg.mxu0
    %v131 = vadd.f32 %v82, %v129
    %v132 = vxor.u32 %v131, 2147483648
    %v133 = vmul.f32 %v132, 1.442695
    %v134 = vpow.pop %v133
    %v135 = vadd.f32 %v134, 1.0
    %v136 = vrcp.pop %v135
    %v137 = vmul.f32 %v135, %v136
    %v138 = vsub.f32 1.0, %v137
    %v139 = vmul.f32 %v136, %v138
    %v140 = vadd.f32 %v136, %v139
    %vm141 = vweird.f32 %v135
    %vm142 = vweird.f32 %v136
    %vm143 = vmor %vm141, %vm142
    %v144 = vsel %vm143, %v136, %v140
    %v145 = vand.u32 2147483647, %v135
    %vm146 = vcmp.eq.f32.partialorder %v145, 8.507059e+37
    %v147 = vand.u32 %v135, 2147483648
    %v148 = vor.u32 1.1754944e-38, %v147
    %v149 = vsel %vm146, %v148, %v144
    %v150 = vmul.f32 1.0, %v149
    %v151 = vtanh.pop %v131
    %v152 = vmul.f32 %v150, 0.0
    %154 = vrot.lane.b32.xlu0 %v151, 80
    %v155 = vpop.permute.xlu0 %154
    %v157 = vmul.f32 %v150, %v155
    %159 = vrot.lane.b32.xlu0 %v157, 16
    %v160 = vpop.permute.xlu0 %159
    %v162 = vadd.f32 %v152, %v160
    %v163 = vtanh.pop %v162
    %165 = vrot.lane.b32.xlu0 %v163, 16
    %v166 = vpop.permute.xlu0 %165
    %v168 = vmul.f32 %v150, %v166
    %v170 = vperm.slane %v107, 0
    %171 = vrot.lane.b32.xlu0 %v170, 32
    %v172 = vpop.permute.xlu0 %171
    %v174 = vmul.f32 %v168, %v172
    %176 = vrot.lane.b32.xlu0 %v174, 96
    %v177 = vpop.permute.xlu0 %176
    %v179 = vsel %vm39, %v177, 0.0
    %180 = vadd.xlane.f32.xlu0 %v179
    %v181 = vpop.xlane.xlu0 %180
    %183 = vrot.lane.b32.xlu0 %v168, 96
    %v184 = vpop.permute.xlu0 %183
    %v185 = vsel %vm39, %v184, 0
    %187 = vmatpush.msra.mxu0 0.0
    %188 = vmatpush.msra.mxu0 0.0
    %189 = vmatpush.msra.mxu0 0.0
    %190 = vmatpush.msra.mxu0 0.0
    %191 = vmatpush.msra.mxu0 0.0
    %192 = vmatpush.msra.mxu0 0.0
    %193 = vmatpush.msra.mxu0 0.0
    %194 = vmatpush.msra.mxu0 0.0
    %195 = vmatpush.msra.mxu0 0.0
    %196 = vmatpush.msra.mxu0 0.0
    %197 = vmatpush.msra.mxu0 0.0
    %198 = vmatpush.msra.mxu0 0.0
    %199 = vmatpush.msra.mxu0 0.0
    %200 = vmatpush.msra.mxu0 0.0
    %201 = vmatpush.msra.mxu0 %v106
    %202 = vmatpush.msra.mxu0 %v105
    %203 = vmatmul.f32.gmra.mxu0 %v185
    %v204 = vpop.f32.mrf.mxu0
    %v205 = vadd.f32 0.0, %v204
    %206 = vdwg.mxu0
    %v207 = vadd.f32 %v85, %v205
    %v208 = vxor.u32 %v207, 2147483648
    %v209 = vmul.f32 %v208, 1.442695
    %v210 = vpow.pop %v209
    %v211 = vadd.f32 %v210, 1.0
    %v212 = vrcp.pop %v211
    %v213 = vmul.f32 %v211, %v212
    %v214 = vsub.f32 1.0, %v213
    %v215 = vmul.f32 %v212, %v214
    %v216 = vadd.f32 %v212, %v215
    %vm217 = vweird.f32 %v211
    %vm218 = vweird.f32 %v212
    %vm219 = vmor %vm217, %vm218
    %v220 = vsel %vm219, %v212, %v216
    %v221 = vand.u32 2147483647, %v211
    %vm222 = vcmp.eq.f32.partialorder %v221, 8.507059e+37
    %v223 = vand.u32 %v211, 2147483648
    %v224 = vor.u32 1.1754944e-38, %v223
    %v225 = vsel %vm222, %v224, %v220
    %v226 = vmul.f32 1.0, %v225
    %v227 = vtanh.pop %v207
    %v228 = vmul.f32 %v226, %v162
    %230 = vrot.lane.b32.xlu0 %v227, 80
    %v231 = vpop.permute.xlu0 %230
    %v233 = vmul.f32 %v226, %v231
    %235 = vrot.lane.b32.xlu0 %v233, 16
    %v236 = vpop.permute.xlu0 %235
    %v238 = vadd.f32 %v228, %v236
    %v239 = vtanh.pop %v238
    %241 = vrot.lane.b32.xlu0 %v239, 16
    %v242 = vpop.permute.xlu0 %241
    %v244 = vmul.f32 %v226, %v242
    %v245 = vmul.f32 %v244, %v172
    %247 = vrot.lane.b32.xlu0 %v245, 96
    %v248 = vpop.permute.xlu0 %247
    %v250 = vsel %vm39, %v248, 0.0
    %251 = vadd.xlane.f32.xlu0 %v250
    %v252 = vpop.xlane.xlu0 %251
    %254 = vrot.lane.b32.xlu0 %v244, 96
    %v255 = vpop.permute.xlu0 %254
    %v256 = vsel %vm39, %v255, 0
    %258 = vmatpush.msra.mxu0 0.0
    %259 = vmatpush.msra.mxu0 0.0
    %260 = vmatpush.msra.mxu0 0.0
    %261 = vmatpush.msra.mxu0 0.0
    %262 = vmatpush.msra.mxu0 0.0
    %263 = vmatpush.msra.mxu0 0.0
    %264 = vmatpush.msra.mxu0 0.0
    %265 = vmatpush.msra.mxu0 0.0
    %266 = vmatpush.msra.mxu0 0.0
    %267 = vmatpush.msra.mxu0 0.0
    %268 = vmatpush.msra.mxu0 0.0
    %269 = vmatpush.msra.mxu0 0.0
    %270 = vmatpush.msra.mxu0 0.0
    %271 = vmatpush.msra.mxu0 0.0
    %272 = vmatpush.msra.mxu0 %v106
    %273 = vmatpush.msra.mxu0 %v105
    %274 = vmatmul.f32.gmra.mxu0 %v256
    %v275 = vpop.f32.mrf.mxu0
    %v276 = vadd.f32 0.0, %v275
    %277 = vdwg.mxu0
    %v278 = vadd.f32 %v88, %v276
    %v279 = vxor.u32 %v278, 2147483648
    %v280 = vmul.f32 %v279, 1.442695
    %v281 = vpow.pop %v280
    %v282 = vadd.f32 %v281, 1.0
    %v283 = vrcp.pop %v282
    %v284 = vmul.f32 %v282, %v283
    %v285 = vsub.f32 1.0, %v284
    %v286 = vmul.f32 %v283, %v285
    %v287 = vadd.f32 %v283, %v286
    %vm288 = vweird.f32 %v282
    %vm289 = vweird.f32 %v283
    %vm290 = vmor %vm288, %vm289
    %v291 = vsel %vm290, %v283, %v287
    %v292 = vand.u32 2147483647, %v282
    %vm293 = vcmp.eq.f32.partialorder %v292, 8.507059e+37
    %v294 = vand.u32 %v282, 2147483648
    %v295 = vor.u32 1.1754944e-38, %v294
    %v296 = vsel %vm293, %v295, %v291
    %v297 = vmul.f32 1.0, %v296
    %v298 = vtanh.pop %v278
    %v299 = vmul.f32 %v297, %v238
    %301 = vrot.lane.b32.xlu0 %v298, 80
    %v302 = vpop.permute.xlu0 %301
    %v304 = vmul.f32 %v297, %v302
    %306 = vrot.lane.b32.xlu0 %v304, 16
    %v307 = vpop.permute.xlu0 %306
    %v309 = vadd.f32 %v299, %v307
    %v310 = vtanh.pop %v309
    %312 = vrot.lane.b32.xlu0 %v310, 16
    %v313 = vpop.permute.xlu0 %312
    %v315 = vmul.f32 %v297, %v313
    %v316 = vmul.f32 %v315, %v172
    %318 = vrot.lane.b32.xlu0 %v316, 96
    %v319 = vpop.permute.xlu0 %318
    %v321 = vsel %vm39, %v319, 0.0
    %322 = vadd.xlane.f32.xlu0 %v321
    %v323 = vpop.xlane.xlu0 %322
    %325 = vrot.lane.b32.xlu0 %v315, 96
    %v326 = vpop.permute.xlu0 %325
    %v327 = vsel %vm39, %v326, 0
    %329 = vmatpush.msra.mxu0 0.0
    %330 = vmatpush.msra.mxu0 0.0
    %331 = vmatpush.msra.mxu0 0.0
    %332 = vmatpush.msra.mxu0 0.0
    %333 = vmatpush.msra.mxu0 0.0
    %334 = vmatpush.msra.mxu0 0.0
    %335 = vmatpush.msra.mxu0 0.0
    %336 = vmatpush.msra.mxu0 0.0
    %337 = vmatpush.msra.mxu0 0.0
    %338 = vmatpush.msra.mxu0 0.0
    %339 = vmatpush.msra.mxu0 0.0
    %340 = vmatpush.msra.mxu0 0.0
    %341 = vmatpush.msra.mxu0 0.0
    %342 = vmatpush.msra.mxu0 0.0
    %343 = vmatpush.msra.mxu0 %v106
    %344 = vmatpush.msra.mxu0 %v105
    %345 = vmatmul.f32.gmra.mxu0 %v327
    %v346 = vpop.f32.mrf.mxu0
    %v347 = vadd.f32 0.0, %v346
    %348 = vdwg.mxu0
    %v349 = vadd.f32 %v91, %v347
    %v350 = vxor.u32 %v349, 2147483648
    %v351 = vmul.f32 %v350, 1.442695
    %v352 = vpow.pop %v351
    %v353 = vadd.f32 %v352, 1.0
    %v354 = vrcp.pop %v353
    %v355 = vmul.f32 %v353, %v354
    %v356 = vsub.f32 1.0, %v355
    %v357 = vmul.f32 %v354, %v356
    %v358 = vadd.f32 %v354, %v357
    %vm359 = vweird.f32 %v353
    %vm360 = vweird.f32 %v354
    %vm361 = vmor %vm359, %vm360
    %v362 = vsel %vm361, %v354, %v358
    %v363 = vand.u32 2147483647, %v353
    %vm364 = vcmp.eq.f32.partialorder %v363, 8.507059e+37
    %v365 = vand.u32 %v353, 2147483648
    %v366 = vor.u32 1.1754944e-38, %v365
    %v367 = vsel %vm364, %v366, %v362
    %v368 = vmul.f32 1.0, %v367
    %v369 = vtanh.pop %v349
    %v370 = vmul.f32 %v368, %v309
    %372 = vrot.lane.b32.xlu0 %v369, 80
    %v373 = vpop.permute.xlu0 %372
    %v375 = vmul.f32 %v368, %v373
    %377 = vrot.lane.b32.xlu0 %v375, 16
    %v378 = vpop.permute.xlu0 %377
    %v380 = vadd.f32 %v370, %v378
    %v381 = vtanh.pop %v380
    %383 = vrot.lane.b32.xlu0 %v381, 16
    %v384 = vpop.permute.xlu0 %383
    %v386 = vmul.f32 %v368, %v384
    %v387 = vmul.f32 %v386, %v172
    %389 = vrot.lane.b32.xlu0 %v387, 96
    %v390 = vpop.permute.xlu0 %389
    %v392 = vsel %vm39, %v390, 0.0
    %393 = vadd.xlane.f32.xlu0 %v392
    %v394 = vpop.xlane.xlu0 %393
    %396 = vrot.lane.b32.xlu0 %v386, 96
    %v397 = vpop.permute.xlu0 %396
    %v398 = vsel %vm39, %v397, 0
    %400 = vmatpush.msra.mxu0 0.0
    %401 = vmatpush.msra.mxu0 0.0
    %402 = vmatpush.msra.mxu0 0.0
    %403 = vmatpush.msra.mxu0 0.0
    %404 = vmatpush.msra.mxu0 0.0
    %405 = vmatpush.msra.mxu0 0.0
    %406 = vmatpush.msra.mxu0 0.0
    %407 = vmatpush.msra.mxu0 0.0
    %408 = vmatpush.msra.mxu0 0.0
    %409 = vmatpush.msra.mxu0 0.0
    %410 = vmatpush.msra.mxu0 0.0
    %411 = vmatpush.msra.mxu0 0.0
    %412 = vmatpush.msra.mxu0 0.0
    %413 = vmatpush.msra.mxu0 0.0
    %414 = vmatpush.msra.mxu0 %v106
    %415 = vmatpush.msra.mxu0 %v105
    %416 = vmatmul.f32.gmra.mxu0 %v398
    %v417 = vpop.f32.mrf.mxu0
    %v418 = vadd.f32 0.0, %v417
    %419 = vdwg.mxu0
    %v420 = vadd.f32 %v94, %v418
    %v421 = vxor.u32 %v420, 2147483648
    %v422 = vmul.f32 %v421, 1.442695
    %v423 = vpow.pop %v422
    %v424 = vadd.f32 %v423, 1.0
    %v425 = vrcp.pop %v424
    %v426 = vmul.f32 %v424, %v425
    %v427 = vsub.f32 1.0, %v426
    %v428 = vmul.f32 %v425, %v427
    %v429 = vadd.f32 %v425, %v428
    %vm430 = vweird.f32 %v424
    %vm431 = vweird.f32 %v425
    %vm432 = vmor %vm430, %vm431
    %v433 = vsel %vm432, %v425, %v429
    %v434 = vand.u32 2147483647, %v424
    %vm435 = vcmp.eq.f32.partialorder %v434, 8.507059e+37
    %v436 = vand.u32 %v424, 2147483648
    %v437 = vor.u32 1.1754944e-38, %v436
    %v438 = vsel %vm435, %v437, %v433
    %v439 = vmul.f32 1.0, %v438
    %v440 = vtanh.pop %v420
    %v441 = vmul.f32 %v439, %v380
    %443 = vrot.lane.b32.xlu0 %v440, 80
    %v444 = vpop.permute.xlu0 %443
    %v446 = vmul.f32 %v439, %v444
    %448 = vrot.lane.b32.xlu0 %v446, 16
    %v449 = vpop.permute.xlu0 %448
    %v451 = vadd.f32 %v441, %v449
    %v452 = vtanh.pop %v451
    %454 = vrot.lane.b32.xlu0 %v452, 16
    %v455 = vpop.permute.xlu0 %454
    %v457 = vmul.f32 %v439, %v455
    %v458 = vmul.f32 %v457, %v172
    %460 = vrot.lane.b32.xlu0 %v458, 96
    %v461 = vpop.permute.xlu0 %460
    %v463 = vsel %vm39, %v461, 0.0
    %464 = vadd.xlane.f32.xlu0 %v463
    %v465 = vpop.xlane.xlu0 %464
    %467 = vrot.lane.b32.xlu0 %v457, 96
    %v468 = vpop.permute.xlu0 %467
    %v469 = vsel %vm39, %v468, 0
    %471 = vmatpush.msra.mxu0 0.0
    %472 = vmatpush.msra.mxu0 0.0
    %473 = vmatpush.msra.mxu0 0.0
    %474 = vmatpush.msra.mxu0 0.0
    %475 = vmatpush.msra.mxu0 0.0
    %476 = vmatpush.msra.mxu0 0.0
    %477 = vmatpush.msra.mxu0 0.0
    %478 = vmatpush.msra.mxu0 0.0
    %479 = vmatpush.msra.mxu0 0.0
    %480 = vmatpush.msra.mxu0 0.0
    %481 = vmatpush.msra.mxu0 0.0
    %482 = vmatpush.msra.mxu0 0.0
    %483 = vmatpush.msra.mxu0 0.0
    %484 = vmatpush.msra.mxu0 0.0
    %485 = vmatpush.msra.mxu0 %v106
    %486 = vmatpush.msra.mxu0 %v105
    %487 = vmatmul.f32.gmra.mxu0 %v469
    %v488 = vpop.f32.mrf.mxu0
    %v489 = vadd.f32 0.0, %v488
    %490 = vdwg.mxu0
    %v491 = vadd.f32 %v97, %v489
    %v492 = vxor.u32 %v491, 2147483648
    %v493 = vmul.f32 %v492, 1.442695
    %v494 = vpow.pop %v493
    %v495 = vadd.f32 %v494, 1.0
    %v496 = vrcp.pop %v495
    %v497 = vmul.f32 %v495, %v496
    %v498 = vsub.f32 1.0, %v497
    %v499 = vmul.f32 %v496, %v498
    %v500 = vadd.f32 %v496, %v499
    %vm501 = vweird.f32 %v495
    %vm502 = vweird.f32 %v496
    %vm503 = vmor %vm501, %vm502
    %v504 = vsel %vm503, %v496, %v500
    %v505 = vand.u32 2147483647, %v495
    %vm506 = vcmp.eq.f32.partialorder %v505, 8.507059e+37
    %v507 = vand.u32 %v495, 2147483648
    %v508 = vor.u32 1.1754944e-38, %v507
    %v509 = vsel %vm506, %v508, %v504
    %v510 = vmul.f32 1.0, %v509
    %v511 = vtanh.pop %v491
    %v512 = vmul.f32 %v510, %v451
    %514 = vrot.lane.b32.xlu0 %v511, 80
    %v515 = vpop.permute.xlu0 %514
    %v517 = vmul.f32 %v510, %v515
    %519 = vrot.lane.b32.xlu0 %v517, 16
    %v520 = vpop.permute.xlu0 %519
    %v522 = vadd.f32 %v512, %v520
    %v523 = vtanh.pop %v522
    %525 = vrot.lane.b32.xlu0 %v523, 16
    %v526 = vpop.permute.xlu0 %525
    %v528 = vmul.f32 %v510, %v526
    %v529 = vmul.f32 %v528, %v172
    %531 = vrot.lane.b32.xlu0 %v529, 96
    %v532 = vpop.permute.xlu0 %531
    %v534 = vsel %vm39, %v532, 0.0
    %535 = vadd.xlane.f32.xlu0 %v534
    %v536 = vpop.xlane.xlu0 %535
    %538 = vrot.lane.b32.xlu0 %v528, 96
    %v539 = vpop.permute.xlu0 %538
    %v540 = vsel %vm39, %v539, 0
    %542 = vmatpush.msra.mxu0 0.0
    %543 = vmatpush.msra.mxu0 0.0
    %544 = vmatpush.msra.mxu0 0.0
    %545 = vmatpush.msra.mxu0 0.0
    %546 = vmatpush.msra.mxu0 0.0
    %547 = vmatpush.msra.mxu0 0.0
    %548 = vmatpush.msra.mxu0 0.0
    %549 = vmatpush.msra.mxu0 0.0
    %550 = vmatpush.msra.mxu0 0.0
    %551 = vmatpush.msra.mxu0 0.0
    %552 = vmatpush.msra.mxu0 0.0
    %553 = vmatpush.msra.mxu0 0.0
    %554 = vmatpush.msra.mxu0 0.0
    %555 = vmatpush.msra.mxu0 0.0
    %556 = vmatpush.msra.mxu0 %v106
    %557 = vmatpush.msra.mxu0 %v105
    %558 = vmatmul.f32.gmra.mxu0 %v540
    %v559 = vpop.f32.mrf.mxu0
    %v560 = vadd.f32 0.0, %v559
    %561 = vdwg.mxu0
    %v562 = vadd.f32 %v100, %v560
    %v563 = vxor.u32 %v562, 2147483648
    %v564 = vmul.f32 %v563, 1.442695
    %v565 = vpow.pop %v564
    %v566 = vadd.f32 %v565, 1.0
    %v567 = vrcp.pop %v566
    %v568 = vmul.f32 %v566, %v567
    %v569 = vsub.f32 1.0, %v568
    %v570 = vmul.f32 %v567, %v569
    %v571 = vadd.f32 %v567, %v570
    %vm572 = vweird.f32 %v566
    %vm573 = vweird.f32 %v567
    %vm574 = vmor %vm572, %vm573
    %v575 = vsel %vm574, %v567, %v571
    %v576 = vand.u32 2147483647, %v566
    %vm577 = vcmp.eq.f32.partialorder %v576, 8.507059e+37
    %v578 = vand.u32 %v566, 2147483648
    %v579 = vor.u32 1.1754944e-38, %v578
    %v580 = vsel %vm577, %v579, %v575
    %v581 = vmul.f32 1.0, %v580
    %v582 = vtanh.pop %v562
    %v583 = vmul.f32 %v581, %v522
    %585 = vrot.lane.b32.xlu0 %v582, 80
    %v586 = vpop.permute.xlu0 %585
    %v588 = vmul.f32 %v581, %v586
    %590 = vrot.lane.b32.xlu0 %v588, 16
    %v591 = vpop.permute.xlu0 %590
    %v593 = vadd.f32 %v583, %v591
    %v594 = vtanh.pop %v593
    %596 = vrot.lane.b32.xlu0 %v594, 16
    %v597 = vpop.permute.xlu0 %596
    %v599 = vmul.f32 %v581, %v597
    %v600 = vmul.f32 %v599, %v172
    %602 = vrot.lane.b32.xlu0 %v600, 96
    %v603 = vpop.permute.xlu0 %602
    %v605 = vsel %vm39, %v603, 0.0
    %606 = vadd.xlane.f32.xlu0 %v605
    %v607 = vpop.xlane.xlu0 %606
    %609 = vrot.lane.b32.xlu0 %v599, 96
    %v610 = vpop.permute.xlu0 %609
    %v611 = vsel %vm39, %v610, 0
    %613 = vmatpush.msra.mxu0 0.0
    %614 = vmatpush.msra.mxu0 0.0
    %615 = vmatpush.msra.mxu0 0.0
    %616 = vmatpush.msra.mxu0 0.0
    %617 = vmatpush.msra.mxu0 0.0
    %618 = vmatpush.msra.mxu0 0.0
    %619 = vmatpush.msra.mxu0 0.0
    %620 = vmatpush.msra.mxu0 0.0
    %621 = vmatpush.msra.mxu0 0.0
    %622 = vmatpush.msra.mxu0 0.0
    %623 = vmatpush.msra.mxu0 0.0
    %624 = vmatpush.msra.mxu0 0.0
    %625 = vmatpush.msra.mxu0 0.0
    %626 = vmatpush.msra.mxu0 0.0
    %627 = vmatpush.msra.mxu0 %v106
    %628 = vmatpush.msra.mxu0 %v105
    %629 = vmatmul.f32.gmra.mxu0 %v611
    %v630 = vpop.f32.mrf.mxu0
    %v631 = vadd.f32 0.0, %v630
    %632 = vdwg.mxu0
    %v633 = vadd.f32 %v103, %v631
    %v634 = vxor.u32 %v633, 2147483648
    %v635 = vmul.f32 %v634, 1.442695
    %v636 = vpow.pop %v635
    %v637 = vadd.f32 %v636, 1.0
    %v638 = vrcp.pop %v637
    %v639 = vmul.f32 %v637, %v638
    %v640 = vsub.f32 1.0, %v639
    %v641 = vmul.f32 %v638, %v640
    %v642 = vadd.f32 %v638, %v641
    %vm643 = vweird.f32 %v637
    %vm644 = vweird.f32 %v638
    %vm645 = vmor %vm643, %vm644
    %v646 = vsel %vm645, %v638, %v642
    %v647 = vand.u32 2147483647, %v637
    %vm648 = vcmp.eq.f32.partialorder %v647, 8.507059e+37
    %v649 = vand.u32 %v637, 2147483648
    %v650 = vor.u32 1.1754944e-38, %v649
    %v651 = vsel %vm648, %v650, %v646
    %v652 = vmul.f32 1.0, %v651
    %v653 = vtanh.pop %v633
    %v654 = vmul.f32 %v652, %v593
    %656 = vrot.lane.b32.xlu0 %v653, 80
    %v657 = vpop.permute.xlu0 %656
    %v659 = vmul.f32 %v652, %v657
    %661 = vrot.lane.b32.xlu0 %v659, 16
    %v662 = vpop.permute.xlu0 %661
    %v664 = vadd.f32 %v654, %v662
    %v665 = vtanh.pop %v664
    %667 = vrot.lane.b32.xlu0 %v665, 16
    %v668 = vpop.permute.xlu0 %667
    %v670 = vmul.f32 %v652, %v668
    %v671 = vmul.f32 %v670, %v172
    %673 = vrot.lane.b32.xlu0 %v671, 96
    %v674 = vpop.permute.xlu0 %673
    %v676 = vsel %vm39, %v674, 0.0
    %677 = vadd.xlane.f32.xlu0 %v676
    %v678 = vpop.xlane.xlu0 %677
    %v680 = vlaneseq
    %v681 = vand.u32 %v680, 127
    %v682 = vperm.slane %v181, %v681
    %v685 = vperm.slane %v252, %v681
    %v688 = vperm.slane %v323, %v681
    %v691 = vperm.slane %v394, %v681
    %v694 = vperm.slane %v465, %v681
    %v697 = vperm.slane %v536, %v681
    %v700 = vperm.slane %v607, %v681
    %v703 = vperm.slane %v678, %v681
    %vm705 = vcmask 1040384
    %v706 = vsel %vm705, %v682, %v685
    %vm707 = vcmask 1041408
    %v708 = vsel %vm707, %v706, %v688
    %vm709 = vcmask 1042432
    %v710 = vsel %vm709, %v708, %v691
    %vm711 = vcmask 1043456
    %v712 = vsel %vm711, %v710, %v694
    %vm713 = vcmask 1044480
    %v714 = vsel %vm713, %v712, %v697
    %vm715 = vcmask 1045504
    %v716 = vsel %vm715, %v714, %v700
    %vm717 = vcmask 1046528
    %v718 = vsel %vm717, %v716, %v703
    %s719 = sld [smem:[#allocation2]]
    %v720 = vstv %s719
    %v721 = vadd.f32 %v718, %v720
    %vm722 = vcmask 64512
    %723 = vst.msk [vmem:[#allocation3] sm:$0xff] %vm722, %v721
    // Predicated region
    $region26: #{tpu_custom_call.1} parent=1 // pred_check
      _
    $region27: #{tpu_custom_call.1} parent=1 // pred_check_branch
      %725 = sbr.rel (0) target = $region29
    $region28: #{tpu_custom_call.1} parent=1 // pred_region
      %727 = vsyncadd [#allocation4], 0
      %s729 = sshll.u32 [#allocation3], 4
      %s730 = int_to_ptr.vmem [resolvable:$true] %s729
      %s731 = sshll.u32 %s6, 4
      %s732 = int_to_ptr.hbm [resolvable:$true] %s731
      %734 = dma.vmem_to_hbm [thread:$0]  %s730, 128, %s732, [#allocation4]
    $region29: #{tpu_custom_call.1} parent=1 // pred_fallthru
      _
    // Predicated region
    $region30: #{tpu_custom_call.1} parent=1 // pred_check
      _
    $region31: #{tpu_custom_call.1} parent=1 // pred_check_branch
      %736 = sbr.rel (0) target = $region33
    $region32: #{tpu_custom_call.1} parent=1 // pred_region
      %738 = dma.done [#allocation4], 128
    $region33: #{tpu_custom_call.1} parent=1 // pred_fallthru
      _
    %739 = vsyncpa [#allocation4], 1

</llo_original>
